<compile_context>
chip_gen: v6e
topology: v6e:2x2x1
jax: 0.10.0
libtpu: 0.0.40
codegen_flags: <defaults>
</compile_context>

<pallas_src>
import functools

import jax
import jax.numpy as jnp
import numpy as np
from jax import lax
from jax.experimental import pallas as pl
from jax.experimental.pallas import tpu as pltpu

_EPS = 1e-6
_SQRT_HALF = 0.7071067811865476


# --------------------------------------------------------------------------
# one-off probes (roll direction, MXU f32 precision support)
# --------------------------------------------------------------------------
def _roll_probe_kernel(x_ref, lane_ref, sub_ref):
    lane_ref[...] = pltpu.roll(x_ref[...], 16, axis=1)
    sub_ref[...] = pltpu.roll(x_ref[...], 3, axis=0)


@functools.lru_cache(maxsize=None)
def _roll_signs(_backend):
    """(lane_sign, sub_sign) such that
    pltpu.roll(x, (s * sign) % size, axis) == jnp.roll(x, s, axis)."""
    x = jnp.arange(16 * 256, dtype=jnp.float32).reshape(16, 256)
    lane, sub = pl.pallas_call(
        _roll_probe_kernel,
        out_shape=(jax.ShapeDtypeStruct((16, 256), jnp.float32),
                   jax.ShapeDtypeStruct((16, 256), jnp.float32)),
    )(x)

    def sign_of(got, shift, axis):
        if bool(jnp.array_equal(got, jnp.roll(x, shift, axis=axis))):
            return 1
        if bool(jnp.array_equal(got, jnp.roll(x, -shift, axis=axis))):
            return -1
        raise RuntimeError("unexpected pltpu.roll semantics")

    return sign_of(lane, 16, 1), sign_of(sub, 3, 0)


def _prec_probe_kernel(a_ref, b_ref, o_ref):
    o_ref[...] = jnp.dot(a_ref[...], b_ref[...],
                         precision=lax.Precision.HIGHEST,
                         preferred_element_type=jnp.float32)


@functools.lru_cache(maxsize=None)
def _dot_precision(_backend):
    """Use full-f32 MXU passes for the kernel dots if the lowering accepts it."""
    try:
        a = jnp.full((128, 128), 1.5, jnp.float32)
        out = pl.pallas_call(
            _prec_probe_kernel,
            out_shape=jax.ShapeDtypeStruct((128, 128), jnp.float32),
        )(a, a)
        jax.block_until_ready(out)
        return lax.Precision.HIGHEST
    except Exception:                      # fall back to default precision
        return None


def _roll(x, shift, axis, sign):
    """Rotate x by `shift` along `axis` with jnp.roll semantics."""
    size = x.shape[axis]
    s = (shift * sign) % size
    if s == 0:
        return x
    return pltpu.roll(x, s, axis=axis)


# --------------------------------------------------------------------------
# elementwise helpers
# --------------------------------------------------------------------------
def _erf(x):
    # Abramowitz & Stegun 7.1.26 (abs err ~1.5e-7); exact divide for accuracy.
    a1, a2, a3, a4, a5 = (0.254829592, -0.284496736, 1.421413741,
                          -1.453152027, 1.061405429)
    p = 0.3275911
    s = jnp.sign(x)
    ax = jnp.abs(x)
    t = 1.0 / (1.0 + p * ax)
    poly = ((((a5 * t + a4) * t + a3) * t + a2) * t + a1) * t
    return s * (1.0 - poly * jnp.exp(-ax * ax))


def _gelu(x):
    # exact (erf-based) GELU, matching torch.nn.GELU()
    return 0.5 * x * (1.0 + _erf(x * _SQRT_HALF))


# --------------------------------------------------------------------------
# kernel
# --------------------------------------------------------------------------
def _d2block_kernel(x_ref, cpar_ref, fc1b_ref, pw_ref, fc1_ref, fc2_ref,
                    out_ref, *, C, H, lane_sign, sub_sign, dot_prec):
    R, L = x_ref.shape               # R = (images per step) * H rows, L = W*C
    x = x_ref[...]

    # ---- hoisted iotas / masks (computed once per grid step) --------------
    lane2 = lax.broadcasted_iota(jnp.int32, (2 * R, L), 1)
    c2 = jnp.bitwise_and(lane2, C - 1)
    gs_masks = []
    sh = 1
    while sh < C:
        gs_masks.append(c2 < C - sh)
        sh *= 2

    grow = lax.broadcasted_iota(jnp.int32, (R, L), 0)
    if (H & (H - 1)) == 0:
        row = jnp.bitwise_and(grow, H - 1)           # row within its image
    else:
        row = lax.rem(grow, H)
    hmask = {}
    for dil in (1, 2, 3):
        for dy in (-dil, dil):
            hmask[dy] = (row >= -dy) & (row < H - dy)

    inv_c = 1.0 / C

    def mm(a, w):
        return jnp.dot(a, w, precision=dot_prec,
                       preferred_element_type=jnp.float32)

    def group_sum2(v):
        # v: (2R, L).  Sum over the C channel lanes of every pixel, broadcast
        # back to all lanes of the group: log2(C) in-group lane rotations.
        s = v
        for step, m in enumerate(gs_masks):
            shift = 1 << step
            lo = _roll(s, -shift, 1, lane_sign)          # lane l <- l + shift
            hi = _roll(s, C - shift, 1, lane_sign)       # lane l <- l + shift - C
            s = s + jnp.where(m, lo, hi)
        return s

    def layer_norm(v, g, b):
        # single pass: E[x], E[x^2] from one fused group reduction.
        s2 = group_sum2(jnp.concatenate([v, v * v], axis=0))
        mean = s2[:R] * inv_c
        var = jnp.maximum(s2[R:] * inv_c - mean * mean, 0.0)
        return (v - mean) * lax.rsqrt(var + _EPS) * g + b

    # ----------------- attention branch (DDConv) ---------------------------
    xn = layer_norm(x, cpar_ref[28:29, :], cpar_ref[29:30, :])

    accs = []
    k = 0
    for dil in (1, 2, 3):
        acc = None                                    # per-dilation accumulator
        for i in range(3):
            dy = (i - 1) * dil
            if dy == 0:
                ybase = xn
            else:
                ybase = jnp.where(hmask[dy], _roll(xn, -dy, 0, sub_sign), 0.0)
            for j in range(3):
                dx = (j - 1) * dil
                tap = ybase if dx == 0 else _roll(ybase, -dx * C, 1, lane_sign)
                # tap-weight row k already carries the W-border zero mask.
                term = tap * cpar_ref[k:k + 1, :]
                acc = term if acc is None else acc + term
                k += 1
        accs.append(acc)
    conv = (accs[0] + accs[1]) + (accs[2] + cpar_ref[27:28, :])

    att = mm(_gelu(conv), pw_ref[...]) + cpar_ref[30:31, :]
    x1 = x + att

    # ----------------------- MLP branch ------------------------------------
    m = layer_norm(x1, cpar_ref[31:32, :], cpar_ref[32:33, :])
    h = _gelu(mm(m, fc1_ref[...]) + fc1b_ref[...])
    m2 = mm(h, fc2_ref[...]) + cpar_ref[33:34, :]

    out_ref[...] = x1 + m2            # drop_path(0.0) == identity


# --------------------------------------------------------------------------
# wrapper
# --------------------------------------------------------------------------
def _pack_params(params, W):
    """Pack the 16 small parameter tensors into the kernel's packed layout."""
    C = params["ln1_w"].shape[0]

    def tile_c(v):                     # (C,) -> (W*C,), lane index = w*C + c
        return jnp.tile(v, W)

    w_idx = np.arange(W)
    rows = []
    for dil, name in ((1, "dw3"), (2, "dw5"), (3, "dw7")):
        wt = params[name + "_w"]                          # (3, 3, C)
        for i in range(3):
            for j in range(3):
                dx = (j - 1) * dil
                valid = ((w_idx + dx >= 0) & (w_idx + dx < W)).astype(np.float32)
                lane_mask = jnp.asarray(np.repeat(valid, C))       # (W*C,)
                rows.append(tile_c(wt[i, j, :]) * lane_mask)
    rows.append(tile_c(params["dw3_b"] + params["dw5_b"] + params["dw7_b"]))
    rows += [tile_c(params["ln1_w"]), tile_c(params["ln1_b"]),
             tile_c(params["pw_b"]),
             tile_c(params["ln2_w"]), tile_c(params["ln2_b"]),
             tile_c(params["fc2_b"])]
    cpar = jnp.stack(rows).astype(jnp.float32)                     # (34, W*C)

    fc1_b = jnp.tile(params["fc1_b"], W).reshape(1, 4 * W * C).astype(jnp.float32)

    def block_diag(wmat):              # (ci, co) -> (W*ci, W*co), f32
        ci, co = wmat.shape
        eye = jnp.eye(W, dtype=wmat.dtype)
        bd = jnp.einsum("ab,io->aibo", eye, wmat).reshape(W * ci, W * co)
        return bd.astype(jnp.float32)

    # TODO(synk): production path should ship the dense weights and build the
    # block-diagonal matrices once in VMEM scratch (they are 15/16 zeros).
    return (cpar, fc1_b, block_diag(params["pw_w"]),
            block_diag(params["fc1_w"]), block_diag(params["fc2_w"]))


@functools.partial(jax.jit,
                   static_argnames=("lane_sign", "sub_sign", "dot_prec"))
def _d2block_jit(x_nchw, params, lane_sign, sub_sign, dot_prec):
    B, C, H, W = x_nchw.shape
    assert C & (C - 1) == 0, "channel count must be a power of two"
    L = W * C

    # Images per grid step: largest divisor of B up to 8, but keep >= 2 grid
    # steps when B >= 2 so both v7x TensorCores get work.
    bt = min(8, B)
    while B % bt:
        bt -= 1
    if B >= 2 and B // bt < 2:
        bt = max(1, bt // 2)
        while B % bt:
            bt -= 1
    rb = bt * H                                    # rows per grid step
    assert rb % 8 == 0, "rows per block must be a multiple of 8"

    # NCHW -> packed lane-dense (B*H, W*C): one fused XLA relayout.
    xp = jnp.transpose(x_nchw, (0, 2, 3, 1)).reshape(B * H, L)

    cpar, fc1_b, pw_bd, fc1_bd, fc2_bd = _pack_params(params, W)

    kernel = functools.partial(_d2block_kernel, C=C, H=H,
                               lane_sign=lane_sign, sub_sign=sub_sign,
                               dot_prec=dot_prec)

    def const(a):
        return pl.BlockSpec(a.shape, lambda g, _nd=a.ndim: (0,) * _nd)

    out = pl.pallas_call(
        kernel,
        out_shape=jax.ShapeDtypeStruct((B * H, L), jnp.float32),
        grid_spec=pltpu.PrefetchScalarGridSpec(
            num_scalar_prefetch=0,
            grid=(B // bt,),
            in_specs=[pl.BlockSpec((rb, L), lambda g: (g, 0)),
                      const(cpar), const(fc1_b),
                      const(pw_bd), const(fc1_bd), const(fc2_bd)],
            out_specs=pl.BlockSpec((rb, L), lambda g: (g, 0)),
        ),
        compiler_params=pltpu.CompilerParams(
            dimension_semantics=("parallel",)),
    )(xp, cpar, fc1_b, pw_bd, fc1_bd, fc2_bd)

    return jnp.transpose(out.reshape(B, H, W, C), (0, 3, 1, 2))


def d2block_forward(x_nchw, params):
    """Public entry point: NCHW float32 in / NCHW float32 out."""
    backend = jax.default_backend()
    lane_sign, sub_sign = _roll_signs(backend)
    dot_prec = _dot_precision(backend)
    return _d2block_jit(x_nchw, params, lane_sign=lane_sign,
                        sub_sign=sub_sign, dot_prec=dot_prec)


# ------------------------- pure-JAX reference -------------------------
def _reference(x_nchw, P):
    hp = lax.Precision.HIGHEST

    def ln(v, w, b):
        u = v.mean(-1, keepdims=True)
        s = ((v - u) ** 2).mean(-1, keepdims=True)
        return (v - u) / jnp.sqrt(s + _EPS) * w + b

    def gelu(v):
        return 0.5 * v * (1.0 + lax.erf(v / jnp.sqrt(2.0)))

    def dwconv(v_nchw, w, b, d):
        C = v_nchw.shape[1]
        wt = jnp.transpose(w, (2, 0, 1))[:, None]  # (C,1,3,3) OIHW
        out = lax.conv_general_dilated(
            v_nchw, wt, window_strides=(1, 1), padding=((d, d), (d, d)),
            rhs_dilation=(d, d),
            dimension_numbers=("NCHW", "OIHW", "NCHW"),
            feature_group_count=C, precision=hp)
        return out + b[None, :, None, None]

    x = jnp.transpose(x_nchw, (0, 2, 3, 1))          # NHWC
    xn = ln(x, P["ln1_w"], P["ln1_b"])
    xc = jnp.transpose(xn, (0, 3, 1, 2))             # NCHW
    conv = (dwconv(xc, P["dw7_w"], P["dw7_b"], 3)
            + dwconv(xc, P["dw5_w"], P["dw5_b"], 2)
            + dwconv(xc, P["dw3_w"], P["dw3_b"], 1))
    a = jnp.transpose(gelu(conv), (0, 2, 3, 1))      # NHWC
    att = jnp.einsum("bhwc,cd->bhwd", a, P["pw_w"], precision=hp) + P["pw_b"]
    x1 = x + att

    m = ln(x1, P["ln2_w"], P["ln2_b"])
    m = gelu(jnp.einsum("bhwc,cd->bhwd", m, P["fc1_w"], precision=hp)
             + P["fc1_b"])
    m = jnp.einsum("bhwd,dc->bhwc", m, P["fc2_w"], precision=hp) + P["fc2_b"]
    x2 = x1 + m                                      # drop_path == Identity
    return jnp.transpose(x2, (0, 3, 1, 2))           # NCHW


def _init_params(key, C):
    ks = jax.random.split(key, 16)
    n = lambda k, shape, s: s * jax.random.normal(k, shape, jnp.float32)
    return {
        "ln1_w": 1.0 + n(ks[0], (C,), 0.1), "ln1_b": n(ks[1], (C,), 0.1),
        "dw3_w": n(ks[2], (3, 3, C), 0.1), "dw3_b": n(ks[3], (C,), 0.01),
        "dw5_w": n(ks[4], (3, 3, C), 0.1), "dw5_b": n(ks[5], (C,), 0.01),
        "dw7_w": n(ks[6], (3, 3, C), 0.1), "dw7_b": n(ks[7], (C,), 0.01),
        "pw_w": n(ks[8], (C, C), 0.1), "pw_b": n(ks[9], (C,), 0.01),
        "ln2_w": 1.0 + n(ks[10], (C,), 0.1), "ln2_b": n(ks[11], (C,), 0.1),
        "fc1_w": n(ks[12], (C, 4 * C), 0.1), "fc1_b": n(ks[13], (4 * C,), 0.01),
        "fc2_w": n(ks[14], (4 * C, C), 0.1), "fc2_b": n(ks[15], (C,), 0.01),
    }


if __name__ == "__main__":
    # Small, but large enough batch to exercise the multi-image grid step
    # (Bt=4 images per step -> M=64 matmuls, 2 grid steps).
    B, C, H, W = 8, 16, 16, 16
    key = jax.random.PRNGKey(0)
    kx, kp = jax.random.split(key)
    x = jax.random.normal(kx, (B, C, H, W), jnp.float32)
    params = _init_params(kp, C)

    out = d2block_forward(x, params)
    out = jax.block_until_ready(out)

    ref = _reference(x, params)
    # 5e-3 covers the (unlikely) case where the in-kernel f32 dots run with
    # reduced MXU pass count; with HIGHEST dots the error is ~1e-5.
    np.testing.assert_allclose(np.asarray(out), np.asarray(ref),
                               rtol=5e-3, atol=5e-3)
    print("KERNEL_OK")
</pallas_src>

<mosaic_0001>
module attributes {stable_mosaic.version = 11 : i64} {
  func.func @_roll_probe_kernel(%arg0: memref<16x256xf32, #tpu.memory_space<vmem>>, %arg1: memref<16x256xf32, #tpu.memory_space<vmem>>, %arg2: memref<16x256xf32, #tpu.memory_space<vmem>>) attributes {dimension_semantics = [], scalar_prefetch = 0 : i64, scratch_operands = 0 : i64, tpu.core_type = #tpu.core_type<tc>} {
    %c0 = arith.constant 0 : index
    %c0_0 = arith.constant 0 : index
    %0 = vector.load %arg0[%c0, %c0_0] : memref<16x256xf32, #tpu.memory_space<vmem>>, vector<16x256xf32>
    %c16_i32 = arith.constant 16 : i32
    %1 = tpu.dynamic_rotate %0 by %c16_i32 dim 1 : vector<16x256xf32>, i32 -> vector<16x256xf32>
    %c0_1 = arith.constant 0 : index
    %c0_2 = arith.constant 0 : index
    %2 = vector.load %arg1[%c0_1, %c0_2] : memref<16x256xf32, #tpu.memory_space<vmem>>, vector<16x256xf32>
    tpu.vector_store %arg1[%c0_1, %c0_2], %1 {strides = array<i32>} : memref<16x256xf32, #tpu.memory_space<vmem>>, vector<16x256xf32>,
    %c0_3 = arith.constant 0 : index
    %c0_4 = arith.constant 0 : index
    %3 = vector.load %arg0[%c0_3, %c0_4] : memref<16x256xf32, #tpu.memory_space<vmem>>, vector<16x256xf32>
    %c3_i32 = arith.constant 3 : i32
    %4 = tpu.dynamic_rotate %3 by %c3_i32 dim 0 : vector<16x256xf32>, i32 -> vector<16x256xf32>
    %c0_5 = arith.constant 0 : index
    %c0_6 = arith.constant 0 : index
    %5 = vector.load %arg2[%c0_5, %c0_6] : memref<16x256xf32, #tpu.memory_space<vmem>>, vector<16x256xf32>
    tpu.vector_store %arg2[%c0_5, %c0_6], %4 {strides = array<i32>} : memref<16x256xf32, #tpu.memory_space<vmem>>, vector<16x256xf32>,
    return
  }
}

</mosaic_0001>

<llo_original>
// kernel: tpu_custom_call.1
$region0: #{tpu_custom_call.1}
  #allocation0 [shape = 'u32[]', space=smem, size = 0x4, offset = 0x4, fixed_abs, tag = 'smem constant byte address 0x4 - core index']
  #allocation1 [shape = 'u32[144,128]{1,0:T(1,128)}', space=vmem, size = 0x12000, scoped, tag = 'internal scratch']
  %s0 = inlined_call_operand.hbm [shape: f32[16,256], index: 0, kind: input, shape index: {}]
  %s1 = inlined_call_operand.hbm [shape: f32[16,256], index: 1, kind: output, shape index: {0}]
  %s2 = inlined_call_operand.hbm [shape: f32[16,256], index: 2, kind: output, shape index: {1}]
  %3 = xla_tuple %s1, %s2
  %s4 = sld [smem:[#allocation0]]
  $region26: #{tpu_custom_call.1} parent=0
    _
  %s6 = ssub.s32 1, %s4
  %s7 = scalar_select 0, %s6, %s4
  $region1: #{tpu_custom_call.1} parent=0
    #allocation2 [shape = 'u8[16384]{0}', space=vmem, size = 0x4000, scoped, tag = 'input window, operand 0, single buffered']
    #allocation3 [shape = 's32[1]{0}', space=sflag, size = 0x4, scoped, tag = 'scoped memory for tpu_custom_call.1']
    #allocation4 [shape = 's32[1]{0}', space=sflag, size = 0x4, scoped, tag = 'scoped memory for tpu_custom_call.1']
    #allocation5 [shape = 'u8[16384]{0}', space=vmem, size = 0x4000, scoped, tag = 'output window, operand 0, single buffered']
    #allocation6 [shape = 'u8[16384]{0}', space=vmem, size = 0x4000, scoped, tag = 'output window, operand 1, single buffered']
    #allocation7 [shape = 's32[1]{0}', space=sflag, size = 0x4, scoped, tag = 'scoped memory for tpu_custom_call.1']
    %8 = vsyncpa [#allocation3], 0
    %9 = vsyncpa [#allocation4], 0
    %10 = vsyncpa [#allocation7], 0
    // Predicated region
    $region2: #{tpu_custom_call.1} parent=1 // pred_check
      _
    $region3: #{tpu_custom_call.1} parent=1 // pred_check_branch
      %12 = sbr.rel (0) target = $region5
    $region4: #{tpu_custom_call.1} parent=1 // pred_region
      %s14 = ssub.s32 512, 512
      %15 = vsyncadd [#allocation3], %s14
      %s16 = sshll.u32 [#allocation2], 4
      %s17 = int_to_ptr.vmem [resolvable:$true] %s16
      %22 = dma.hbm_to_vmem [thread:$0]  %s0, 512, %s17, [#allocation3], 256, 256, 16
    $region5: #{tpu_custom_call.1} parent=1 // pred_fallthru
      _
    // Predicated region
    $region6: #{tpu_custom_call.1} parent=1 // pred_check
      _
    $region7: #{tpu_custom_call.1} parent=1 // pred_check_branch
      %24 = sbr.rel (0) target = $region9
    $region8: #{tpu_custom_call.1} parent=1 // pred_region
      %25 = dma.done [#allocation3], 512
    $region9: #{tpu_custom_call.1} parent=1 // pred_fallthru
      _
    %v26 = vld [vmem:[#allocation2] sm:$0xff]
    %v27 = vld [vmem:[#allocation2 + $0x8] sm:$0xff]
    %v28 = vld [vmem:[#allocation2 + $0x10] sm:$0xff]
    %v29 = vld [vmem:[#allocation2 + $0x18] sm:$0xff]
    %30 = vrot.lane.b32.xlu0 %v26, 16
    %v31 = vpop.permute.xlu0 %30
    %32 = vrot.lane.b32.xlu0 %v28, 16
    %v33 = vpop.permute.xlu0 %32
    %34 = vrot.lane.b32.xlu0 %v27, 16
    %v35 = vpop.permute.xlu0 %34
    %36 = vrot.lane.b32.xlu0 %v29, 16
    %v37 = vpop.permute.xlu0 %36
    %v38 = vlaneseq
    %v39 = vand.u32 %v38, 127
    %vm40 = vcmp.lt.s32.totalorder %v39, 16
    %v41 = vsel %vm40, %v31, %v35
    %v42 = vsel %vm40, %v33, %v37
    %v43 = vsel %vm40, %v35, %v31
    %v44 = vsel %vm40, %v37, %v33
    %45 = vst [vmem:[#allocation5] sm:$0xff] %v43
    %46 = vst [vmem:[#allocation5 + $0x8] sm:$0xff] %v41
    %47 = vst [vmem:[#allocation5 + $0x10] sm:$0xff] %v44
    %48 = vst [vmem:[#allocation5 + $0x18] sm:$0xff] %v42
    %v49 = vld [vmem:[#allocation2] sm:$0xff]
    %v50 = vld [vmem:[#allocation2 + $0x8] sm:$0xff]
    %v51 = vld [vmem:[#allocation2 + $0x10] sm:$0xff]
    %v52 = vld [vmem:[#allocation2 + $0x18] sm:$0xff]
    %v53 = vrot.slane %v49, 5
    %v54 = vrot.slane %v50, 5
    %v55 = vrot.slane %v51, 5
    %v56 = vrot.slane %v52, 5
    %v57 = vlaneseq
    %v58 = vshrl.u32 %v57, 7
    %vm59 = vcmp.lt.s32.totalorder %v58, 3
    %v60 = vsel %vm59, %v53, %v55
    %v61 = vsel %vm59, %v54, %v56
    %v62 = vsel %vm59, %v55, %v53
    %v63 = vsel %vm59, %v56, %v54
    %64 = vst [vmem:[#allocation6] sm:$0xff] %v62
    %65 = vst [vmem:[#allocation6 + $0x8] sm:$0xff] %v63
    %66 = vst [vmem:[#allocation6 + $0x10] sm:$0xff] %v60
    %67 = vst [vmem:[#allocation6 + $0x18] sm:$0xff] %v61
    // Predicated region
    $region10: #{tpu_custom_call.1} parent=1 // pred_check
      _
    $region11: #{tpu_custom_call.1} parent=1 // pred_check_branch
      %69 = sbr.rel (0) target = $region13
    $region12: #{tpu_custom_call.1} parent=1 // pred_region
      %s71 = ssub.s32 512, 512
      %72 = vsyncadd [#allocation4], %s71
      %s73 = sshll.u32 [#allocation5], 4
      %s74 = int_to_ptr.vmem [resolvable:$true] %s73
      %79 = dma.vmem_to_hbm [thread:$0]  %s74, 512, %s1, [#allocation4], 256, 256, 16
    $region13: #{tpu_custom_call.1} parent=1 // pred_fallthru
      _
    // Predicated region
    $region14: #{tpu_custom_call.1} parent=1 // pred_check
      _
    $region15: #{tpu_custom_call.1} parent=1 // pred_check_branch
      %81 = sbr.rel (0) target = $region17
    $region16: #{tpu_custom_call.1} parent=1 // pred_region
      %s83 = ssub.s32 512, 512
      %84 = vsyncadd [#allocation7], %s83
      %s85 = sshll.u32 [#allocation6], 4
      %s86 = int_to_ptr.vmem [resolvable:$true] %s85
      %91 = dma.vmem_to_hbm [thread:$0]  %s86, 512, %s2, [#allocation7], 256, 256, 16
    $region17: #{tpu_custom_call.1} parent=1 // pred_fallthru
      _
    // Predicated region
    $region18: #{tpu_custom_call.1} parent=1 // pred_check
      _
    $region19: #{tpu_custom_call.1} parent=1 // pred_check_branch
      %93 = sbr.rel (0) target = $region21
    $region20: #{tpu_custom_call.1} parent=1 // pred_region
      %94 = dma.done [#allocation4], 512
    $region21: #{tpu_custom_call.1} parent=1 // pred_fallthru
      _
    // Predicated region
    $region22: #{tpu_custom_call.1} parent=1 // pred_check
      _
    $region23: #{tpu_custom_call.1} parent=1 // pred_check_branch
      %96 = sbr.rel (0) target = $region25
    $region24: #{tpu_custom_call.1} parent=1 // pred_region
      %97 = dma.done [#allocation7], 512
    $region25: #{tpu_custom_call.1} parent=1 // pred_fallthru
      _
    %98 = vsyncpa [#allocation3], 1
    %99 = vsyncpa [#allocation4], 1
    %100 = vsyncpa [#allocation7], 1

</llo_original>
